<compile_context>
chip_gen: v7x
topology: tpu7x:2x2x1
jax: 0.10.0
libtpu: 0.0.40
codegen_flags: <defaults>
</compile_context>

<pallas_src>
import jax
import jax.numpy as jnp
from jax.experimental import pallas as pl
from jax.experimental.pallas import tpu as pltpu

LEAKY_SLOPE = 0.01  # torch.nn.LeakyReLU default negative_slope


def _cdiscriminator_kernel(x_ref, w1_ref, ws_ref, bs_ref, out_ref):
    """x_ref: (tb, groups*in_feat) f32 packed input tile.
    w1_ref: (groups*in_feat, W) bf16 block-diag layer-1 weight.
    ws_ref: (4, W, W) bf16 block-diag weights for layers 2..4 and the fused head.
    bs_ref: (5, W) f32 biases (rows 0..3 hidden layers, row 4 fused head).
    out_ref: (tb, W) f32 lane-dense packed head output."""
    biases = bs_ref[...]  # (5, W) f32, tiny, loaded once

    def lrelu(h):
        return jnp.where(h >= 0.0, h, LEAKY_SLOPE * h)

    # layer 1: bf16 MXU matmul, f32 accumulate + epilogue
    h = jnp.dot(x_ref[...].astype(jnp.bfloat16), w1_ref[...],
                preferred_element_type=jnp.float32) + biases[0:1, :]
    h = lrelu(h)

    # layers 2..4: block-diagonal (W, W) weights -> all 128 lanes busy
    for l in range(3):
        h = jnp.dot(h.astype(jnp.bfloat16), ws_ref[l],
                    preferred_element_type=jnp.float32) + biases[l + 1:l + 2, :]
        h = lrelu(h)

    # fused critic + classifier head (zero-padded per group) -> lane-dense store
    out = jnp.dot(h.astype(jnp.bfloat16), ws_ref[3],
                  preferred_element_type=jnp.float32) + biases[4:5, :]
    out_ref[...] = out.astype(out_ref.dtype)


def cdiscriminator_forward(lv, params, *, block_b=4096):
    """lv: (B, in_feat) float32.  params: PyTorch-layout weights (out, in) / biases (out,).
    Returns (validity (B, 1), classes (B, num_cls))."""
    B, in_feat = lv.shape
    latent = params["w1"].shape[0]
    num_cls = params["wk"].shape[0]
    n_head = 1 + num_cls
    assert n_head <= latent, "fused head must fit inside one latent-wide lane group"

    # How many batch rows are packed side-by-side into the 128-lane vreg.
    if latent < 128 and 128 % latent == 0:
        groups = 128 // latent
    else:
        groups = 1                       # latent already lane-dense (or odd size): no packing
    W = groups * latent                  # packed hidden / output width (128 in the packed case)

    # ---- one-time host-side weight repacking -----------------------------------
    def t(w):                            # (out, in) -> (in, out)
        return jnp.asarray(w, jnp.float32).T

    def bd(w):                           # block-diagonal replication across lane groups
        return w if groups == 1 else jnp.kron(jnp.eye(groups, dtype=w.dtype), w)

    def rowvec(b):                       # (latent,) -> (W,) tiled per group
        return jnp.tile(jnp.asarray(b, jnp.float32), groups)

    # fused critic + classifier head, zero-padded to a full latent-wide group
    wht = jnp.concatenate([jnp.asarray(params["wc"], jnp.float32),
                           jnp.asarray(params["wk"], jnp.float32)], axis=0).T   # (latent, n_head)
    wht = jnp.pad(wht, ((0, 0), (0, latent - n_head)))                          # (latent, latent)
    bh = jnp.pad(jnp.concatenate([jnp.asarray(params["bc"], jnp.float32),
                                  jnp.asarray(params["bk"], jnp.float32)]),
                 (0, latent - n_head))                                           # (latent,)

    w1bd = bd(t(params["w1"])).astype(jnp.bfloat16)                              # (groups*in_feat, W)
    wsbd = jnp.stack([bd(t(params["w2"])), bd(t(params["w3"])),
                      bd(t(params["w4"])), bd(wht)]).astype(jnp.bfloat16)        # (4, W, W)
    bs = jnp.stack([rowvec(params["b1"]), rowvec(params["b2"]),
                    rowvec(params["b3"]), rowvec(params["b4"]), rowvec(bh)])     # (5, W)

    # ---- batch packing & tiling --------------------------------------------------
    x = lv.astype(jnp.float32)
    b4 = pl.cdiv(B, groups) * groups
    if b4 != B:                                       # only ragged batches pay a pad copy
        x = jnp.pad(x, ((0, b4 - B), (0, 0)))
    xp = x.reshape(b4 // groups, groups * in_feat)    # row-major merge: free reshape
    bp = b4 // groups                                 # packed batch rows

    blk = max(8, (int(block_b) // groups // 8) * 8)   # requested tile in packed rows
    if bp >= 16:
        # >=2 grid steps so the "parallel" axis shards across both v7x TensorCores;
        # 8-aligned, floor-based to minimize remainder padding.
        tb = min(blk, max(8, (bp // 2 // 8) * 8))
    else:
        tb = bp                                       # single full-extent block, no padding
    bp_pad = pl.cdiv(bp, tb) * tb
    if bp_pad != bp:
        xp = jnp.pad(xp, ((0, bp_pad - bp), (0, 0)))
    grid = (bp_pad // tb,)

    in_specs = [
        pl.BlockSpec((tb, groups * in_feat), lambda i: (i, 0)),   # packed input, tiled over batch
        pl.BlockSpec(w1bd.shape, lambda i: (0, 0)),               # constants: same block every step
        pl.BlockSpec(wsbd.shape, lambda i: (0, 0, 0)),
        pl.BlockSpec(bs.shape, lambda i: (0, 0)),
    ]
    out_spec = pl.BlockSpec((tb, W), lambda i: (i, 0))            # lane-dense output tile

    out = pl.pallas_call(
        _cdiscriminator_kernel,
        out_shape=jax.ShapeDtypeStruct((bp_pad, W), jnp.float32),
        grid=grid,
        in_specs=in_specs,
        out_specs=out_spec,
        compiler_params=pltpu.CompilerParams(
            dimension_semantics=("parallel",),        # batch tiles are independent
            vmem_limit_bytes=32 * 1024 * 1024,        # few-MiB footprint; safe on all gens
        ),
    )(xp, w1bd, wsbd, bs)

    # Unpack: (bp_pad, groups*latent) -> (bp_pad*groups, latent) is a free row-major reshape.
    outs = out.reshape(bp_pad * groups, latent)[:B]
    validity = outs[:, :1]
    classes = outs[:, 1:n_head]          # == classes.view(B, -1) in the PyTorch module
    return validity, classes


def make_params(key, in_feat, latent, num_cls):
    """Deterministic synthetic init (PyTorch Linear weight layout: (out, in))."""
    ks = jax.random.split(key, 12)
    scale = 0.1

    def w(k, out_f, in_f):
        return scale * jax.random.normal(k, (out_f, in_f), jnp.float32)

    def b(k, out_f):
        return scale * jax.random.normal(k, (out_f,), jnp.float32)

    return {
        "w1": w(ks[0], latent, in_feat), "b1": b(ks[1], latent),
        "w2": w(ks[2], latent, latent),  "b2": b(ks[3], latent),
        "w3": w(ks[4], latent, latent),  "b3": b(ks[5], latent),
        "w4": w(ks[6], latent, latent),  "b4": b(ks[7], latent),
        "wc": w(ks[8], 1, latent),       "bc": b(ks[9], 1),
        "wk": w(ks[10], num_cls, latent), "bk": b(ks[11], num_cls),
    }


def reference_forward(lv, params):
    """Pure-JAX f32 reference mirroring the PyTorch module."""
    def linear(h, w, b):
        return h @ w.T + b

    def lrelu(h):
        return jnp.where(h >= 0, h, LEAKY_SLOPE * h)

    h = lv
    h = lrelu(linear(h, params["w1"], params["b1"]))
    h = lrelu(linear(h, params["w2"], params["b2"]))
    h = lrelu(linear(h, params["w3"], params["b3"]))
    h = lrelu(linear(h, params["w4"], params["b4"]))
    validity = linear(h, params["wc"], params["bc"])
    classes = linear(h, params["wk"], params["bk"]).reshape(lv.shape[0], -1)
    return validity, classes


if __name__ == "__main__":
    # small shapes consistent with the module: lv is (batch, in_feat)
    B, IN_FEAT, LATENT, NUM_CLS = 8, 4, 32, 3

    key = jax.random.PRNGKey(0)
    k_x, k_p, k_x2 = jax.random.split(key, 3)
    lv = jax.random.normal(k_x, (B, IN_FEAT), jnp.float32)
    params = make_params(k_p, IN_FEAT, LATENT, NUM_CLS)

    validity, classes = cdiscriminator_forward(lv, params)
    jax.block_until_ready((validity, classes))

    # correctness vs pure-JAX f32 reference (bf16 MXU matmuls => looser tolerance)
    v_ref, c_ref = reference_forward(lv, params)
    assert validity.shape == (B, 1) and classes.shape == (B, NUM_CLS)
    assert jnp.allclose(validity, v_ref, atol=2e-2, rtol=2e-2)
    assert jnp.allclose(classes, c_ref, atol=2e-2, rtol=2e-2)

    # larger ragged batch: exercises packing pad, multi-step grid and remainder padding
    B2 = 70
    lv2 = jax.random.normal(k_x2, (B2, IN_FEAT), jnp.float32)
    v2, c2 = cdiscriminator_forward(lv2, params)
    jax.block_until_ready((v2, c2))
    v2_ref, c2_ref = reference_forward(lv2, params)
    assert v2.shape == (B2, 1) and c2.shape == (B2, NUM_CLS)
    assert jnp.allclose(v2, v2_ref, atol=2e-2, rtol=2e-2)
    assert jnp.allclose(c2, c2_ref, atol=2e-2, rtol=2e-2)

    print("KERNEL_OK")
</pallas_src>

<mosaic_0001>
module attributes {stable_mosaic.version = 11 : i64} {
  func.func @_cdiscriminator_kernel(%arg0: i32, %arg1: memref<2x16xf32, #tpu.memory_space<vmem>>, %arg2: memref<16x128xbf16, #tpu.memory_space<vmem>>, %arg3: memref<4x128x128xbf16, #tpu.memory_space<vmem>>, %arg4: memref<5x128xf32, #tpu.memory_space<vmem>>, %arg5: memref<2x128xf32, #tpu.memory_space<vmem>>) attributes {dimension_semantics = [#tpu.dimension_semantics<parallel>], iteration_bounds = array<i64: 1>, scalar_prefetch = 0 : i64, scratch_operands = 0 : i64, tpu.core_type = #tpu.core_type<tc>, window_params = [{transform_indices = @transform_0, window_bounds = array<i64: 2, 16>}, {pipeline_mode = #tpu.pipeline_mode<synchronous>, transform_indices = @transform_1, window_bounds = array<i64: 16, 128>}, {pipeline_mode = #tpu.pipeline_mode<synchronous>, transform_indices = @transform_2, window_bounds = array<i64: 4, 128, 128>}, {pipeline_mode = #tpu.pipeline_mode<synchronous>, transform_indices = @transform_3, window_bounds = array<i64: 5, 128>}, {transform_indices = @transform_4, window_bounds = array<i64: 2, 128>}]} {
    %c0 = arith.constant 0 : index
    %c0_0 = arith.constant 0 : index
    %0 = vector.load %arg4[%c0, %c0_0] : memref<5x128xf32, #tpu.memory_space<vmem>>, vector<5x128xf32>
    %c0_1 = arith.constant 0 : index
    %c0_2 = arith.constant 0 : index
    %1 = vector.load %arg1[%c0_1, %c0_2] : memref<2x16xf32, #tpu.memory_space<vmem>>, vector<2x16xf32>
    %2 = arith.truncf %1 : vector<2x16xf32> to vector<2x16xbf16>
    %c0_3 = arith.constant 0 : index
    %c0_4 = arith.constant 0 : index
    %3 = vector.load %arg2[%c0_3, %c0_4] : memref<16x128xbf16, #tpu.memory_space<vmem>>, vector<16x128xbf16>
    %cst = arith.constant dense<0.000000e+00> : vector<2x128xf32>
    %4 = tpu.matmul %2, %3, %cst {dimension_numbers = #tpu.dot_dimension_numbers<[1], [0], [0], [1], [0, 0, 1, 1], [], []>} : vector<2x16xbf16>, vector<16x128xbf16>, vector<2x128xf32> -> vector<2x128xf32>
    %5 = vector.extract_strided_slice %0 {offsets = [0, 0], sizes = [1, 128], strides = [1, 1]} : vector<5x128xf32> to vector<1x128xf32>
    %6 = vector.broadcast %5 : vector<1x128xf32> to vector<2x128xf32>
    %7 = arith.addf %4, %6 : vector<2x128xf32>
    %cst_5 = arith.constant 0.000000e+00 : f32
    %8 = vector.broadcast %cst_5 : f32 to vector<2x128xf32>
    %9 = arith.cmpf oge, %7, %8 : vector<2x128xf32>
    %cst_6 = arith.constant 0.00999999977 : f32
    %10 = vector.broadcast %cst_6 : f32 to vector<2x128xf32>
    %11 = arith.mulf %10, %7 : vector<2x128xf32>
    %12 = arith.select %9, %7, %11 : vector<2x128xi1>, vector<2x128xf32>
    %13 = arith.truncf %12 : vector<2x128xf32> to vector<2x128xbf16>
    %c0_7 = arith.constant 0 : index
    %c0_8 = arith.constant 0 : index
    %c0_9 = arith.constant 0 : index
    %14 = vector.load %arg3[%c0_7, %c0_8, %c0_9] : memref<4x128x128xbf16, #tpu.memory_space<vmem>>, vector<1x128x128xbf16>
    %15 = vector.shape_cast %14 : vector<1x128x128xbf16> to vector<128x128xbf16>
    %cst_10 = arith.constant dense<0.000000e+00> : vector<2x128xf32>
    %16 = tpu.matmul %13, %15, %cst_10 {dimension_numbers = #tpu.dot_dimension_numbers<[1], [0], [0], [1], [0, 0, 1, 1], [], []>} : vector<2x128xbf16>, vector<128x128xbf16>, vector<2x128xf32> -> vector<2x128xf32>
    %17 = vector.extract_strided_slice %0 {offsets = [1, 0], sizes = [1, 128], strides = [1, 1]} : vector<5x128xf32> to vector<1x128xf32>
    %18 = vector.broadcast %17 : vector<1x128xf32> to vector<2x128xf32>
    %19 = arith.addf %16, %18 : vector<2x128xf32>
    %cst_11 = arith.constant 0.000000e+00 : f32
    %20 = vector.broadcast %cst_11 : f32 to vector<2x128xf32>
    %21 = arith.cmpf oge, %19, %20 : vector<2x128xf32>
    %cst_12 = arith.constant 0.00999999977 : f32
    %22 = vector.broadcast %cst_12 : f32 to vector<2x128xf32>
    %23 = arith.mulf %22, %19 : vector<2x128xf32>
    %24 = arith.select %21, %19, %23 : vector<2x128xi1>, vector<2x128xf32>
    %25 = arith.truncf %24 : vector<2x128xf32> to vector<2x128xbf16>
    %c1 = arith.constant 1 : index
    %c0_13 = arith.constant 0 : index
    %c0_14 = arith.constant 0 : index
    %26 = vector.load %arg3[%c1, %c0_13, %c0_14] : memref<4x128x128xbf16, #tpu.memory_space<vmem>>, vector<1x128x128xbf16>
    %27 = vector.shape_cast %26 : vector<1x128x128xbf16> to vector<128x128xbf16>
    %cst_15 = arith.constant dense<0.000000e+00> : vector<2x128xf32>
    %28 = tpu.matmul %25, %27, %cst_15 {dimension_numbers = #tpu.dot_dimension_numbers<[1], [0], [0], [1], [0, 0, 1, 1], [], []>} : vector<2x128xbf16>, vector<128x128xbf16>, vector<2x128xf32> -> vector<2x128xf32>
    %29 = vector.extract_strided_slice %0 {offsets = [2, 0], sizes = [1, 128], strides = [1, 1]} : vector<5x128xf32> to vector<1x128xf32>
    %30 = vector.broadcast %29 : vector<1x128xf32> to vector<2x128xf32>
    %31 = arith.addf %28, %30 : vector<2x128xf32>
    %cst_16 = arith.constant 0.000000e+00 : f32
    %32 = vector.broadcast %cst_16 : f32 to vector<2x128xf32>
    %33 = arith.cmpf oge, %31, %32 : vector<2x128xf32>
    %cst_17 = arith.constant 0.00999999977 : f32
    %34 = vector.broadcast %cst_17 : f32 to vector<2x128xf32>
    %35 = arith.mulf %34, %31 : vector<2x128xf32>
    %36 = arith.select %33, %31, %35 : vector<2x128xi1>, vector<2x128xf32>
    %37 = arith.truncf %36 : vector<2x128xf32> to vector<2x128xbf16>
    %c2 = arith.constant 2 : index
    %c0_18 = arith.constant 0 : index
    %c0_19 = arith.constant 0 : index
    %38 = vector.load %arg3[%c2, %c0_18, %c0_19] : memref<4x128x128xbf16, #tpu.memory_space<vmem>>, vector<1x128x128xbf16>
    %39 = vector.shape_cast %38 : vector<1x128x128xbf16> to vector<128x128xbf16>
    %cst_20 = arith.constant dense<0.000000e+00> : vector<2x128xf32>
    %40 = tpu.matmul %37, %39, %cst_20 {dimension_numbers = #tpu.dot_dimension_numbers<[1], [0], [0], [1], [0, 0, 1, 1], [], []>} : vector<2x128xbf16>, vector<128x128xbf16>, vector<2x128xf32> -> vector<2x128xf32>
    %41 = vector.extract_strided_slice %0 {offsets = [3, 0], sizes = [1, 128], strides = [1, 1]} : vector<5x128xf32> to vector<1x128xf32>
    %42 = vector.broadcast %41 : vector<1x128xf32> to vector<2x128xf32>
    %43 = arith.addf %40, %42 : vector<2x128xf32>
    %cst_21 = arith.constant 0.000000e+00 : f32
    %44 = vector.broadcast %cst_21 : f32 to vector<2x128xf32>
    %45 = arith.cmpf oge, %43, %44 : vector<2x128xf32>
    %cst_22 = arith.constant 0.00999999977 : f32
    %46 = vector.broadcast %cst_22 : f32 to vector<2x128xf32>
    %47 = arith.mulf %46, %43 : vector<2x128xf32>
    %48 = arith.select %45, %43, %47 : vector<2x128xi1>, vector<2x128xf32>
    %49 = arith.truncf %48 : vector<2x128xf32> to vector<2x128xbf16>
    %c3 = arith.constant 3 : index
    %c0_23 = arith.constant 0 : index
    %c0_24 = arith.constant 0 : index
    %50 = vector.load %arg3[%c3, %c0_23, %c0_24] : memref<4x128x128xbf16, #tpu.memory_space<vmem>>, vector<1x128x128xbf16>
    %51 = vector.shape_cast %50 : vector<1x128x128xbf16> to vector<128x128xbf16>
    %cst_25 = arith.constant dense<0.000000e+00> : vector<2x128xf32>
    %52 = tpu.matmul %49, %51, %cst_25 {dimension_numbers = #tpu.dot_dimension_numbers<[1], [0], [0], [1], [0, 0, 1, 1], [], []>} : vector<2x128xbf16>, vector<128x128xbf16>, vector<2x128xf32> -> vector<2x128xf32>
    %53 = vector.extract_strided_slice %0 {offsets = [4, 0], sizes = [1, 128], strides = [1, 1]} : vector<5x128xf32> to vector<1x128xf32>
    %54 = vector.broadcast %53 : vector<1x128xf32> to vector<2x128xf32>
    %55 = arith.addf %52, %54 : vector<2x128xf32>
    %c0_26 = arith.constant 0 : index
    %c0_27 = arith.constant 0 : index
    %56 = vector.load %arg5[%c0_26, %c0_27] : memref<2x128xf32, #tpu.memory_space<vmem>>, vector<2x128xf32>
    tpu.vector_store %arg5[%c0_26, %c0_27], %55 {strides = array<i32>} : memref<2x128xf32, #tpu.memory_space<vmem>>, vector<2x128xf32>,
    return
  }
  func.func @transform_0(%arg0: i32) -> (i32, i32) {
    %c0_i32 = arith.constant 0 : i32
    %c0_i32_0 = arith.constant 0 : i32
    return %arg0, %c0_i32 : i32, i32
  }
  func.func @transform_1(%arg0: i32) -> (i32, i32) {
    %c0_i32 = arith.constant 0 : i32
    %c0_i32_0 = arith.constant 0 : i32
    %c0_i32_1 = arith.constant 0 : i32
    return %c0_i32, %c0_i32_0 : i32, i32
  }
  func.func @transform_2(%arg0: i32) -> (i32, i32, i32) {
    %c0_i32 = arith.constant 0 : i32
    %c0_i32_0 = arith.constant 0 : i32
    %c0_i32_1 = arith.constant 0 : i32
    %c0_i32_2 = arith.constant 0 : i32
    return %c0_i32, %c0_i32_0, %c0_i32_1 : i32, i32, i32
  }
  func.func @transform_3(%arg0: i32) -> (i32, i32) {
    %c0_i32 = arith.constant 0 : i32
    %c0_i32_0 = arith.constant 0 : i32
    %c0_i32_1 = arith.constant 0 : i32
    return %c0_i32, %c0_i32_0 : i32, i32
  }
  func.func @transform_4(%arg0: i32) -> (i32, i32) {
    %c0_i32 = arith.constant 0 : i32
    %c0_i32_0 = arith.constant 0 : i32
    return %arg0, %c0_i32 : i32, i32
  }
}

</mosaic_0001>

<llo_original>
// kernel: tpu_custom_call.1
$region0: #{tpu_custom_call.1}
  #allocation0 [shape = 'u32[]', space=smem, size = 0x4, offset = 0x4, fixed_abs, tag = 'smem constant byte address 0x4 - core index']
  #allocation1 [shape = 'u32[144,128]{1,0:T(1,128)}', space=vmem, size = 0x12000, scoped, tag = 'internal scratch']
  %s0 = inlined_call_operand.hbm [shape: f32[2,16], index: 0, kind: input, shape index: {}]
  %s1 = inlined_call_operand.hbm [shape: bf16[16,128], index: 1, kind: input, shape index: {}]
  %s2 = inlined_call_operand.hbm [shape: bf16[4,128,128], index: 2, kind: input, shape index: {}]
  %s3 = inlined_call_operand.vmem [shape: f32[5,128], index: 3, kind: input, shape index: {}]
  %s4 = inlined_call_operand.hbm [shape: f32[2,128], index: 4, kind: output, shape index: {}]
  %s5 = sld [smem:[#allocation0]]
  $region38: #{tpu_custom_call.1} parent=0
    _
  %s7 = ssub.s32 1, %s5
  %s8 = scalar_select 0, %s7, %s5
  $region1: #{tpu_custom_call.1} parent=0
    #allocation2 [shape = 'u8[1024]{0}', space=vmem, size = 0x400, scoped, tag = 'input window, operand 0, single buffered']
    #allocation3 [shape = 's32[1]{0}', space=sflag, size = 0x4, scoped, tag = 'scoped memory for tpu_custom_call.1']
    #allocation4 [shape = 's32[1]{0}', space=sflag, size = 0x4, scoped, tag = 'scoped memory for tpu_custom_call.1']
    #allocation5 [shape = 'u8[4096]{0}', space=vmem, size = 0x1000, scoped, tag = 'input window, operand 1, single buffered']
    #allocation6 [shape = 's32[1]{0}', space=sflag, size = 0x4, scoped, tag = 'scoped memory for tpu_custom_call.1']
    #allocation7 [shape = 'u8[131072]{0}', space=vmem, size = 0x20000, scoped, tag = 'input window, operand 2, single buffered']
    #allocation8 [shape = 'u8[1024]{0}', space=vmem, size = 0x400, scoped, tag = 'output window, operand 0, single buffered']
    %9 = vsyncpa [#allocation3], 0
    %10 = vsyncpa [#allocation6], 0
    %11 = vsyncpa [#allocation4], 0
    // Predicated region
    $region2: #{tpu_custom_call.1} parent=1 // pred_check
      _
    $region3: #{tpu_custom_call.1} parent=1 // pred_check_branch
      %13 = sbr.rel (0) target = $region5
    $region4: #{tpu_custom_call.1} parent=1 // pred_region
      %s15 = ssub.s32 32, 32
      %16 = vsyncadd [#allocation3], %s15
      %s18 = sshll.u32 [#allocation2], 4
      %s19 = int_to_ptr.vmem [resolvable:$true] %s18
      %21 = dma.hbm_to_vmem [thread:$0]  %s0, 32, %s19, [#allocation3]
    $region5: #{tpu_custom_call.1} parent=1 // pred_fallthru
      _
    // Predicated region
    $region6: #{tpu_custom_call.1} parent=1 // pred_check
      _
    $region7: #{tpu_custom_call.1} parent=1 // pred_check_branch
      %23 = sbr.rel (0) target = $region9
    $region8: #{tpu_custom_call.1} parent=1 // pred_region
      %s25 = ssub.s32 128, 128
      %26 = vsyncadd [#allocation6], %s25
      %s27 = sshll.u32 [#allocation5], 4
      %s28 = int_to_ptr.vmem [resolvable:$true] %s27
      %33 = dma.hbm_to_vmem [thread:$0]  %s1, 128, %s28, [#allocation6], 64, 64, 4
    $region9: #{tpu_custom_call.1} parent=1 // pred_fallthru
      _
    // Predicated region
    $region10: #{tpu_custom_call.1} parent=1 // pred_check
      _
    $region11: #{tpu_custom_call.1} parent=1 // pred_check_branch
      %35 = sbr.rel (0) target = $region13
    $region12: #{tpu_custom_call.1} parent=1 // pred_region
      %s37 = ssub.s32 4096, 4096
      %38 = vsyncadd [#allocation6], %s37
      %s39 = sshll.u32 [#allocation7], 4
      %s40 = int_to_ptr.vmem [resolvable:$true] %s39
      %45 = dma.hbm_to_vmem [thread:$0]  %s2, 4096, %s40, [#allocation6], 64, 64, 4
    $region13: #{tpu_custom_call.1} parent=1 // pred_fallthru
      _
    // Predicated region
    $region14: #{tpu_custom_call.1} parent=1 // pred_check
      _
    $region15: #{tpu_custom_call.1} parent=1 // pred_check_branch
      %47 = sbr.rel (0) target = $region17
    $region16: #{tpu_custom_call.1} parent=1 // pred_region
      _
    $region17: #{tpu_custom_call.1} parent=1 // pred_fallthru
      _
    // Predicated region
    $region18: #{tpu_custom_call.1} parent=1 // pred_check
      _
    $region19: #{tpu_custom_call.1} parent=1 // pred_check_branch
      %49 = sbr.rel (0) target = $region21
    $region20: #{tpu_custom_call.1} parent=1 // pred_region
      %50 = dma.done [#allocation3], 32
    $region21: #{tpu_custom_call.1} parent=1 // pred_fallthru
      _
    // Predicated region
    $region22: #{tpu_custom_call.1} parent=1 // pred_check
      _
    $region23: #{tpu_custom_call.1} parent=1 // pred_check_branch
      %52 = sbr.rel (0) target = $region25
    $region24: #{tpu_custom_call.1} parent=1 // pred_region
      %53 = dma.done [#allocation6], 128
    $region25: #{tpu_custom_call.1} parent=1 // pred_fallthru
      _
    // Predicated region
    $region26: #{tpu_custom_call.1} parent=1 // pred_check
      _
    $region27: #{tpu_custom_call.1} parent=1 // pred_check_branch
      %55 = sbr.rel (0) target = $region29
    $region28: #{tpu_custom_call.1} parent=1 // pred_region
      %56 = dma.done [#allocation6], 4096
    $region29: #{tpu_custom_call.1} parent=1 // pred_fallthru
      _
    %v58 = vld [vmem:[%s3] sm:$0x1f]
    %v59 = vld [vmem:[#allocation2] sm:$0x3]
    %v60 = vpack.c.bf16 %v59, %v59
    %v61 = vld [vmem:[#allocation5] sm:$0xf]
    %v62 = vld [vmem:[#allocation5 + $0x4] sm:$0xf]
    %v63 = vlaneseq
    %v64 = vshrl.u32 %v63, 7
    %v65 = vsub.s32 0, %v64
    %v66 = vrot.slane %v58, %v65
    %v69 = vunpack.c.l.b16 %v61
    %v70 = vunpack.c.l.b16 %v62
    %v71 = vpack.c.b16 %v70, %v69
    %vm73 = vcmask 130048
    %v75 = vsel %vm73, %v60, 0
    %77 = vmatprep.subr.bf16.mxu0 0
    %78 = vmatpush1.bf16.msra.mxu0 %v71
    %79 = vmatprep.subr.bf16.mxu0 0
    %80 = vmatpush1.bf16.msra.mxu0 0
    %81 = vmatprep.subr.bf16.mxu0 0
    %82 = vmatpush1.bf16.msra.mxu0 0
    %83 = vmatprep.subr.bf16.mxu0 0
    %84 = vmatpush1.bf16.msra.mxu0 0
    %85 = vmatprep.subr.bf16.mxu0 0
    %86 = vmatpush1.bf16.msra.mxu0 0
    %87 = vmatprep.subr.bf16.mxu0 0
    %88 = vmatpush1.bf16.msra.mxu0 0
    %89 = vmatprep.subr.bf16.mxu0 0
    %90 = vmatpush1.bf16.msra.mxu0 0
    %91 = vmatprep.subr.bf16.mxu0 0
    %92 = vmatpush1.bf16.msra.mxu0 0
    %93 = vmatprep.subr.bf16.mxu0 0
    %94 = vmatpush1.bf16.msra.mxu0 0
    %95 = vmatprep.subr.bf16.mxu0 0
    %96 = vmatpush1.bf16.msra.mxu0 0
    %97 = vmatprep.subr.bf16.mxu0 0
    %98 = vmatpush1.bf16.msra.mxu0 0
    %99 = vmatprep.subr.bf16.mxu0 0
    %100 = vmatpush1.bf16.msra.mxu0 0
    %101 = vmatprep.subr.bf16.mxu0 0
    %102 = vmatpush1.bf16.msra.mxu0 0
    %103 = vmatprep.subr.bf16.mxu0 0
    %104 = vmatpush1.bf16.msra.mxu0 0
    %105 = vmatprep.subr.bf16.mxu0 0
    %106 = vmatpush1.bf16.msra.mxu0 0
    %107 = vmatprep.subr.bf16.mxu0 0
    %108 = vmatpush1.bf16.msra.mxu0 0
    %109 = vmatprep.mubr.bf16.mxu0 0
    %110 = vmatmul.mubr.bf16.gmra.mrb[0].mxu0 %v75
    %v111 = vpop.f32.mrb[0].mxu0
    %v112 = vadd.f32 %v66, %v111
    %v113 = vpop.f32.mrb[0].mxu0
    %v114 = vpop.f32.mrb[0].mxu0
    %v115 = vpop.f32.mrb[0].mxu0
    %116 = vdwg.mxu0
    %vm117 = vcmp.ge.f32.partialorder %v112, 0.0
    %v118 = vmul.f32 %v112, 0.01
    %v119 = vsel %vm117, %v112, %v118
    %v120 = vpack.c.bf16 %v119, %v119
    %v121 = vld [vmem:[#allocation7] sm:$0xf]
    %v122 = vld [vmem:[#allocation7 + $0x4] sm:$0xf]
    %v123 = vld [vmem:[#allocation7 + $0x8] sm:$0xf]
    %v124 = vld [vmem:[#allocation7 + $0xc] sm:$0xf]
    %v125 = vld [vmem:[#allocation7 + $0x10] sm:$0xf]
    %v126 = vld [vmem:[#allocation7 + $0x14] sm:$0xf]
    %v127 = vld [vmem:[#allocation7 + $0x18] sm:$0xf]
    %v128 = vld [vmem:[#allocation7 + $0x1c] sm:$0xf]
    %v129 = vld [vmem:[#allocation7 + $0x20] sm:$0xf]
    %v130 = vld [vmem:[#allocation7 + $0x24] sm:$0xf]
    %v131 = vld [vmem:[#allocation7 + $0x28] sm:$0xf]
    %v132 = vld [vmem:[#allocation7 + $0x2c] sm:$0xf]
    %v133 = vld [vmem:[#allocation7 + $0x30] sm:$0xf]
    %v134 = vld [vmem:[#allocation7 + $0x34] sm:$0xf]
    %v135 = vld [vmem:[#allocation7 + $0x38] sm:$0xf]
    %v136 = vld [vmem:[#allocation7 + $0x3c] sm:$0xf]
    %v137 = vlaneseq
    %v138 = vshrl.u32 %v137, 7
    %v139 = vsub.s32 1, %v138
    %v140 = vrot.slane %v58, %v139
    %v157 = vunpack.c.l.b16 %v121
    %v158 = vunpack.c.l.b16 %v122
    %v159 = vunpack.c.l.b16 %v123
    %v160 = vunpack.c.l.b16 %v124
    %v161 = vunpack.c.l.b16 %v125
    %v162 = vunpack.c.l.b16 %v126
    %v163 = vunpack.c.l.b16 %v127
    %v164 = vunpack.c.l.b16 %v128
    %v165 = vunpack.c.l.b16 %v129
    %v166 = vunpack.c.l.b16 %v130
    %v167 = vunpack.c.l.b16 %v131
    %v168 = vunpack.c.l.b16 %v132
    %v169 = vunpack.c.l.b16 %v133
    %v170 = vunpack.c.l.b16 %v134
    %v171 = vunpack.c.l.b16 %v135
    %v172 = vunpack.c.l.b16 %v136
    %v173 = vpack.c.b16 %v158, %v157
    %v174 = vpack.c.b16 %v160, %v159
    %v175 = vpack.c.b16 %v162, %v161
    %v176 = vpack.c.b16 %v164, %v163
    %v177 = vpack.c.b16 %v166, %v165
    %v178 = vpack.c.b16 %v168, %v167
    %v179 = vpack.c.b16 %v170, %v169
    %v180 = vpack.c.b16 %v172, %v171
    %189 = vmatprep.subr.bf16.mxu0 0
    %190 = vmatpush1.bf16.msra.mxu0 %v173
    %191 = vmatprep.subr.bf16.mxu0 0
    %192 = vmatpush1.bf16.msra.mxu0 %v174
    %193 = vmatprep.subr.bf16.mxu0 0
    %194 = vmatpush1.bf16.msra.mxu0 %v175
    %195 = vmatprep.subr.bf16.mxu0 0
    %196 = vmatpush1.bf16.msra.mxu0 %v176
    %197 = vmatprep.subr.bf16.mxu0 0
    %198 = vmatpush1.bf16.msra.mxu0 %v177
    %199 = vmatprep.subr.bf16.mxu0 0
    %200 = vmatpush1.bf16.msra.mxu0 %v178
    %201 = vmatprep.subr.bf16.mxu0 0
    %202 = vmatpush1.bf16.msra.mxu0 %v179
    %203 = vmatprep.subr.bf16.mxu0 0
    %204 = vmatpush1.bf16.msra.mxu0 %v180
    %205 = vmatprep.subr.bf16.mxu0 0
    %206 = vmatpush1.bf16.msra.mxu0 0
    %207 = vmatprep.subr.bf16.mxu0 0
    %208 = vmatpush1.bf16.msra.mxu0 0
    %209 = vmatprep.subr.bf16.mxu0 0
    %210 = vmatpush1.bf16.msra.mxu0 0
    %211 = vmatprep.subr.bf16.mxu0 0
    %212 = vmatpush1.bf16.msra.mxu0 0
    %213 = vmatprep.subr.bf16.mxu0 0
    %214 = vmatpush1.bf16.msra.mxu0 0
    %215 = vmatprep.subr.bf16.mxu0 0
    %216 = vmatpush1.bf16.msra.mxu0 0
    %217 = vmatprep.subr.bf16.mxu0 0
    %218 = vmatpush1.bf16.msra.mxu0 0
    %219 = vmatprep.subr.bf16.mxu0 0
    %220 = vmatpush1.bf16.msra.mxu0 0
    %221 = vmatprep.mubr.bf16.mxu0 0
    %222 = vmatmul.mubr.bf16.gmra.mrb[0].mxu0 %v120
    %v223 = vpop.f32.mrb[0].mxu0
    %v224 = vadd.f32 %v140, %v223
    %v225 = vpop.f32.mrb[0].mxu0
    %v226 = vpop.f32.mrb[0].mxu0
    %v227 = vpop.f32.mrb[0].mxu0
    %228 = vdwg.mxu0
    %vm229 = vcmp.ge.f32.partialorder %v224, 0.0
    %v230 = vmul.f32 %v224, 0.01
    %v231 = vsel %vm229, %v224, %v230
    %v232 = vpack.c.bf16 %v231, %v231
    %s233 = scalar_lea.vmem [#allocation7], 64
    %v234 = vld [vmem:[%s233] sm:$0xf]
    %v235 = vld [vmem:[%s233 + $0x4] sm:$0xf]
    %v236 = vld [vmem:[%s233 + $0x8] sm:$0xf]
    %v237 = vld [vmem:[%s233 + $0xc] sm:$0xf]
    %v238 = vld [vmem:[%s233 + $0x10] sm:$0xf]
    %v239 = vld [vmem:[%s233 + $0x14] sm:$0xf]
    %v240 = vld [vmem:[%s233 + $0x18] sm:$0xf]
    %v241 = vld [vmem:[%s233 + $0x1c] sm:$0xf]
    %v242 = vld [vmem:[%s233 + $0x20] sm:$0xf]
    %v243 = vld [vmem:[%s233 + $0x24] sm:$0xf]
    %v244 = vld [vmem:[%s233 + $0x28] sm:$0xf]
    %v245 = vld [vmem:[%s233 + $0x2c] sm:$0xf]
    %v246 = vld [vmem:[%s233 + $0x30] sm:$0xf]
    %v247 = vld [vmem:[%s233 + $0x34] sm:$0xf]
    %v248 = vld [vmem:[%s233 + $0x38] sm:$0xf]
    %v249 = vld [vmem:[%s233 + $0x3c] sm:$0xf]
    %v250 = vlaneseq
    %v251 = vshrl.u32 %v250, 7
    %v252 = vsub.s32 2, %v251
    %v253 = vrot.slane %v58, %v252
    %v270 = vunpack.c.l.b16 %v234
    %v271 = vunpack.c.l.b16 %v235
    %v272 = vunpack.c.l.b16 %v236
    %v273 = vunpack.c.l.b16 %v237
    %v274 = vunpack.c.l.b16 %v238
    %v275 = vunpack.c.l.b16 %v239
    %v276 = vunpack.c.l.b16 %v240
    %v277 = vunpack.c.l.b16 %v241
    %v278 = vunpack.c.l.b16 %v242
    %v279 = vunpack.c.l.b16 %v243
    %v280 = vunpack.c.l.b16 %v244
    %v281 = vunpack.c.l.b16 %v245
    %v282 = vunpack.c.l.b16 %v246
    %v283 = vunpack.c.l.b16 %v247
    %v284 = vunpack.c.l.b16 %v248
    %v285 = vunpack.c.l.b16 %v249
    %v286 = vpack.c.b16 %v271, %v270
    %v287 = vpack.c.b16 %v273, %v272
    %v288 = vpack.c.b16 %v275, %v274
    %v289 = vpack.c.b16 %v277, %v276
    %v290 = vpack.c.b16 %v279, %v278
    %v291 = vpack.c.b16 %v281, %v280
    %v292 = vpack.c.b16 %v283, %v282
    %v293 = vpack.c.b16 %v285, %v284
    %302 = vmatprep.subr.bf16.mxu0 0
    %303 = vmatpush1.bf16.msra.mxu0 %v286
    %304 = vmatprep.subr.bf16.mxu0 0
    %305 = vmatpush1.bf16.msra.mxu0 %v287
    %306 = vmatprep.subr.bf16.mxu0 0
    %307 = vmatpush1.bf16.msra.mxu0 %v288
    %308 = vmatprep.subr.bf16.mxu0 0
    %309 = vmatpush1.bf16.msra.mxu0 %v289
    %310 = vmatprep.subr.bf16.mxu0 0
    %311 = vmatpush1.bf16.msra.mxu0 %v290
    %312 = vmatprep.subr.bf16.mxu0 0
    %313 = vmatpush1.bf16.msra.mxu0 %v291
    %314 = vmatprep.subr.bf16.mxu0 0
    %315 = vmatpush1.bf16.msra.mxu0 %v292
    %316 = vmatprep.subr.bf16.mxu0 0
    %317 = vmatpush1.bf16.msra.mxu0 %v293
    %318 = vmatprep.subr.bf16.mxu0 0
    %319 = vmatpush1.bf16.msra.mxu0 0
    %320 = vmatprep.subr.bf16.mxu0 0
    %321 = vmatpush1.bf16.msra.mxu0 0
    %322 = vmatprep.subr.bf16.mxu0 0
    %323 = vmatpush1.bf16.msra.mxu0 0
    %324 = vmatprep.subr.bf16.mxu0 0
    %325 = vmatpush1.bf16.msra.mxu0 0
    %326 = vmatprep.subr.bf16.mxu0 0
    %327 = vmatpush1.bf16.msra.mxu0 0
    %328 = vmatprep.subr.bf16.mxu0 0
    %329 = vmatpush1.bf16.msra.mxu0 0
    %330 = vmatprep.subr.bf16.mxu0 0
    %331 = vmatpush1.bf16.msra.mxu0 0
    %332 = vmatprep.subr.bf16.mxu0 0
    %333 = vmatpush1.bf16.msra.mxu0 0
    %334 = vmatprep.mubr.bf16.mxu0 0
    %335 = vmatmul.mubr.bf16.gmra.mrb[0].mxu0 %v232
    %v336 = vpop.f32.mrb[0].mxu0
    %v337 = vadd.f32 %v253, %v336
    %v338 = vpop.f32.mrb[0].mxu0
    %v339 = vpop.f32.mrb[0].mxu0
    %v340 = vpop.f32.mrb[0].mxu0
    %341 = vdwg.mxu0
    %vm342 = vcmp.ge.f32.partialorder %v337, 0.0
    %v343 = vmul.f32 %v337, 0.01
    %v344 = vsel %vm342, %v337, %v343
    %v345 = vpack.c.bf16 %v344, %v344
    %s346 = scalar_lea.vmem [#allocation7], 128
    %v347 = vld [vmem:[%s346] sm:$0xf]
    %v348 = vld [vmem:[%s346 + $0x4] sm:$0xf]
    %v349 = vld [vmem:[%s346 + $0x8] sm:$0xf]
    %v350 = vld [vmem:[%s346 + $0xc] sm:$0xf]
    %v351 = vld [vmem:[%s346 + $0x10] sm:$0xf]
    %v352 = vld [vmem:[%s346 + $0x14] sm:$0xf]
    %v353 = vld [vmem:[%s346 + $0x18] sm:$0xf]
    %v354 = vld [vmem:[%s346 + $0x1c] sm:$0xf]
    %v355 = vld [vmem:[%s346 + $0x20] sm:$0xf]
    %v356 = vld [vmem:[%s346 + $0x24] sm:$0xf]
    %v357 = vld [vmem:[%s346 + $0x28] sm:$0xf]
    %v358 = vld [vmem:[%s346 + $0x2c] sm:$0xf]
    %v359 = vld [vmem:[%s346 + $0x30] sm:$0xf]
    %v360 = vld [vmem:[%s346 + $0x34] sm:$0xf]
    %v361 = vld [vmem:[%s346 + $0x38] sm:$0xf]
    %v362 = vld [vmem:[%s346 + $0x3c] sm:$0xf]
    %v363 = vlaneseq
    %v364 = vshrl.u32 %v363, 7
    %v365 = vsub.s32 3, %v364
    %v366 = vrot.slane %v58, %v365
    %v383 = vunpack.c.l.b16 %v347
    %v384 = vunpack.c.l.b16 %v348
    %v385 = vunpack.c.l.b16 %v349
    %v386 = vunpack.c.l.b16 %v350
    %v387 = vunpack.c.l.b16 %v351
    %v388 = vunpack.c.l.b16 %v352
    %v389 = vunpack.c.l.b16 %v353
    %v390 = vunpack.c.l.b16 %v354
    %v391 = vunpack.c.l.b16 %v355
    %v392 = vunpack.c.l.b16 %v356
    %v393 = vunpack.c.l.b16 %v357
    %v394 = vunpack.c.l.b16 %v358
    %v395 = vunpack.c.l.b16 %v359
    %v396 = vunpack.c.l.b16 %v360
    %v397 = vunpack.c.l.b16 %v361
    %v398 = vunpack.c.l.b16 %v362
    %v399 = vpack.c.b16 %v384, %v383
    %v400 = vpack.c.b16 %v386, %v385
    %v401 = vpack.c.b16 %v388, %v387
    %v402 = vpack.c.b16 %v390, %v389
    %v403 = vpack.c.b16 %v392, %v391
    %v404 = vpack.c.b16 %v394, %v393
    %v405 = vpack.c.b16 %v396, %v395
    %v406 = vpack.c.b16 %v398, %v397
    %415 = vmatprep.subr.bf16.mxu0 0
    %416 = vmatpush1.bf16.msra.mxu0 %v399
    %417 = vmatprep.subr.bf16.mxu0 0
    %418 = vmatpush1.bf16.msra.mxu0 %v400
    %419 = vmatprep.subr.bf16.mxu0 0
    %420 = vmatpush1.bf16.msra.mxu0 %v401
    %421 = vmatprep.subr.bf16.mxu0 0
    %422 = vmatpush1.bf16.msra.mxu0 %v402
    %423 = vmatprep.subr.bf16.mxu0 0
    %424 = vmatpush1.bf16.msra.mxu0 %v403
    %425 = vmatprep.subr.bf16.mxu0 0
    %426 = vmatpush1.bf16.msra.mxu0 %v404
    %427 = vmatprep.subr.bf16.mxu0 0
    %428 = vmatpush1.bf16.msra.mxu0 %v405
    %429 = vmatprep.subr.bf16.mxu0 0
    %430 = vmatpush1.bf16.msra.mxu0 %v406
    %431 = vmatprep.subr.bf16.mxu0 0
    %432 = vmatpush1.bf16.msra.mxu0 0
    %433 = vmatprep.subr.bf16.mxu0 0
    %434 = vmatpush1.bf16.msra.mxu0 0
    %435 = vmatprep.subr.bf16.mxu0 0
    %436 = vmatpush1.bf16.msra.mxu0 0
    %437 = vmatprep.subr.bf16.mxu0 0
    %438 = vmatpush1.bf16.msra.mxu0 0
    %439 = vmatprep.subr.bf16.mxu0 0
    %440 = vmatpush1.bf16.msra.mxu0 0
    %441 = vmatprep.subr.bf16.mxu0 0
    %442 = vmatpush1.bf16.msra.mxu0 0
    %443 = vmatprep.subr.bf16.mxu0 0
    %444 = vmatpush1.bf16.msra.mxu0 0
    %445 = vmatprep.subr.bf16.mxu0 0
    %446 = vmatpush1.bf16.msra.mxu0 0
    %447 = vmatprep.mubr.bf16.mxu0 0
    %448 = vmatmul.mubr.bf16.gmra.mrb[0].mxu0 %v345
    %v449 = vpop.f32.mrb[0].mxu0
    %v450 = vadd.f32 %v366, %v449
    %v451 = vpop.f32.mrb[0].mxu0
    %v452 = vpop.f32.mrb[0].mxu0
    %v453 = vpop.f32.mrb[0].mxu0
    %454 = vdwg.mxu0
    %vm455 = vcmp.ge.f32.partialorder %v450, 0.0
    %v456 = vmul.f32 %v450, 0.01
    %v457 = vsel %vm455, %v450, %v456
    %v458 = vpack.c.bf16 %v457, %v457
    %s459 = scalar_lea.vmem [#allocation7], 192
    %v460 = vld [vmem:[%s459] sm:$0xf]
    %v461 = vld [vmem:[%s459 + $0x4] sm:$0xf]
    %v462 = vld [vmem:[%s459 + $0x8] sm:$0xf]
    %v463 = vld [vmem:[%s459 + $0xc] sm:$0xf]
    %v464 = vld [vmem:[%s459 + $0x10] sm:$0xf]
    %v465 = vld [vmem:[%s459 + $0x14] sm:$0xf]
    %v466 = vld [vmem:[%s459 + $0x18] sm:$0xf]
    %v467 = vld [vmem:[%s459 + $0x1c] sm:$0xf]
    %v468 = vld [vmem:[%s459 + $0x20] sm:$0xf]
    %v469 = vld [vmem:[%s459 + $0x24] sm:$0xf]
    %v470 = vld [vmem:[%s459 + $0x28] sm:$0xf]
    %v471 = vld [vmem:[%s459 + $0x2c] sm:$0xf]
    %v472 = vld [vmem:[%s459 + $0x30] sm:$0xf]
    %v473 = vld [vmem:[%s459 + $0x34] sm:$0xf]
    %v474 = vld [vmem:[%s459 + $0x38] sm:$0xf]
    %v475 = vld [vmem:[%s459 + $0x3c] sm:$0xf]
    %v476 = vlaneseq
    %v477 = vshrl.u32 %v476, 7
    %v478 = vsub.s32 4, %v477
    %v479 = vrot.slane %v58, %v478
    %v496 = vunpack.c.l.b16 %v460
    %v497 = vunpack.c.l.b16 %v461
    %v498 = vunpack.c.l.b16 %v462
    %v499 = vunpack.c.l.b16 %v463
    %v500 = vunpack.c.l.b16 %v464
    %v501 = vunpack.c.l.b16 %v465
    %v502 = vunpack.c.l.b16 %v466
    %v503 = vunpack.c.l.b16 %v467
    %v504 = vunpack.c.l.b16 %v468
    %v505 = vunpack.c.l.b16 %v469
    %v506 = vunpack.c.l.b16 %v470
    %v507 = vunpack.c.l.b16 %v471
    %v508 = vunpack.c.l.b16 %v472
    %v509 = vunpack.c.l.b16 %v473
    %v510 = vunpack.c.l.b16 %v474
    %v511 = vunpack.c.l.b16 %v475
    %v512 = vpack.c.b16 %v497, %v496
    %v513 = vpack.c.b16 %v499, %v498
    %v514 = vpack.c.b16 %v501, %v500
    %v515 = vpack.c.b16 %v503, %v502
    %v516 = vpack.c.b16 %v505, %v504
    %v517 = vpack.c.b16 %v507, %v506
    %v518 = vpack.c.b16 %v509, %v508
    %v519 = vpack.c.b16 %v511, %v510
    %528 = vmatprep.subr.bf16.mxu0 0
    %529 = vmatpush1.bf16.msra.mxu0 %v512
    %530 = vmatprep.subr.bf16.mxu0 0
    %531 = vmatpush1.bf16.msra.mxu0 %v513
    %532 = vmatprep.subr.bf16.mxu0 0
    %533 = vmatpush1.bf16.msra.mxu0 %v514
    %534 = vmatprep.subr.bf16.mxu0 0
    %535 = vmatpush1.bf16.msra.mxu0 %v515
    %536 = vmatprep.subr.bf16.mxu0 0
    %537 = vmatpush1.bf16.msra.mxu0 %v516
    %538 = vmatprep.subr.bf16.mxu0 0
    %539 = vmatpush1.bf16.msra.mxu0 %v517
    %540 = vmatprep.subr.bf16.mxu0 0
    %541 = vmatpush1.bf16.msra.mxu0 %v518
    %542 = vmatprep.subr.bf16.mxu0 0
    %543 = vmatpush1.bf16.msra.mxu0 %v519
    %544 = vmatprep.subr.bf16.mxu0 0
    %545 = vmatpush1.bf16.msra.mxu0 0
    %546 = vmatprep.subr.bf16.mxu0 0
    %547 = vmatpush1.bf16.msra.mxu0 0
    %548 = vmatprep.subr.bf16.mxu0 0
    %549 = vmatpush1.bf16.msra.mxu0 0
    %550 = vmatprep.subr.bf16.mxu0 0
    %551 = vmatpush1.bf16.msra.mxu0 0
    %552 = vmatprep.subr.bf16.mxu0 0
    %553 = vmatpush1.bf16.msra.mxu0 0
    %554 = vmatprep.subr.bf16.mxu0 0
    %555 = vmatpush1.bf16.msra.mxu0 0
    %556 = vmatprep.subr.bf16.mxu0 0
    %557 = vmatpush1.bf16.msra.mxu0 0
    %558 = vmatprep.subr.bf16.mxu0 0
    %559 = vmatpush1.bf16.msra.mxu0 0
    %560 = vmatprep.mubr.bf16.mxu0 0
    %561 = vmatmul.mubr.bf16.gmra.mrb[0].mxu0 %v458
    %v562 = vpop.f32.mrb[0].mxu0
    %v563 = vadd.f32 %v479, %v562
    %v564 = vpop.f32.mrb[0].mxu0
    %v565 = vpop.f32.mrb[0].mxu0
    %v566 = vpop.f32.mrb[0].mxu0
    %567 = vdwg.mxu0
    %568 = vst [vmem:[#allocation8] sm:$0x3] %v563
    // Predicated region
    $region30: #{tpu_custom_call.1} parent=1 // pred_check
      _
    $region31: #{tpu_custom_call.1} parent=1 // pred_check_branch
      %570 = sbr.rel (0) target = $region33
    $region32: #{tpu_custom_call.1} parent=1 // pred_region
      %s572 = ssub.s32 32, 32
      %573 = vsyncadd [#allocation4], %s572
      %s575 = sshll.u32 [#allocation8], 4
      %s576 = int_to_ptr.vmem [resolvable:$true] %s575
      %578 = dma.vmem_to_hbm [thread:$0]  %s576, 32, %s4, [#allocation4]
    $region33: #{tpu_custom_call.1} parent=1 // pred_fallthru
      _
    // Predicated region
    $region34: #{tpu_custom_call.1} parent=1 // pred_check
      _
    $region35: #{tpu_custom_call.1} parent=1 // pred_check_branch
      %580 = sbr.rel (0) target = $region37
    $region36: #{tpu_custom_call.1} parent=1 // pred_region
      %581 = dma.done [#allocation4], 32
    $region37: #{tpu_custom_call.1} parent=1 // pred_fallthru
      _
    %582 = vsyncpa [#allocation3], 1
    %583 = vsyncpa [#allocation6], 1
    %584 = vsyncpa [#allocation4], 1

</llo_original>
